<compile_context>
chip_gen: v7x
topology: tpu7x:2x2x1
jax: 0.10.0
libtpu: 0.0.40
codegen_flags: <defaults>
</compile_context>

<pallas_src>
import functools
import math

import jax
import jax.numpy as jnp
from jax.experimental import pallas as pl
from jax.experimental.pallas import tpu as pltpu


def _nbytes(a):
    return a.size * a.dtype.itemsize


# --------------------------------------------------------------------------- #
# Kernel 1: clip_project MLP (Linear -> Tanh -> Linear), one gridless call.
# --------------------------------------------------------------------------- #
def _clip_mlp_kernel(x_ref, w1_ref, b1_ref, w2_ref, b2_ref, o_ref):
    bf16, f32 = jnp.bfloat16, jnp.float32
    h = jnp.dot(x_ref[...].astype(bf16), w1_ref[...],
                preferred_element_type=f32) + b1_ref[...]
    h = jnp.tanh(h)                                      # f32 elementwise
    o_ref[...] = jnp.dot(h.astype(bf16), w2_ref[...],
                         preferred_element_type=f32) + b2_ref[...]


def clip_project(prefix, w1, b1, w2, b2):
    """prefix: (B, P) f32 -> (B, out) f32 via fused Linear-Tanh-Linear (one call)."""
    B = prefix.shape[0]
    out = w2.shape[1]
    return pl.pallas_call(
        _clip_mlp_kernel,
        out_shape=jax.ShapeDtypeStruct((B, out), jnp.float32),
    )(prefix, w1, b1, w2, b2)


# --------------------------------------------------------------------------- #
# Kernel 2: the entire GPT-2 transformer stack in one call, grid over layers.
#   Residual stream (B*S, D) stays resident in the output VMEM block; per-layer
#   weights stream in via layer-indexed BlockSpecs (double-buffered prefetch).
# --------------------------------------------------------------------------- #
def _gpt2_stack_kernel(h_ref, mask_ref,
                       ln1g_ref, ln1b_ref, wqkv_ref, bqkv_ref,
                       wproj_ref, bproj_ref,
                       ln2g_ref, ln2b_ref, wfc_ref, bfc_ref, wmlp_ref, bmlp_ref,
                       o_ref, *, n_head, batch, seq):
    f32, bf16 = jnp.float32, jnp.bfloat16
    B, S = batch, seq

    @pl.when(pl.program_id(0) == 0)
    def _():
        o_ref[...] = h_ref[...]          # load the residual stream once, layer 0

    h = o_ref[...]                        # (M, D) f32, M = B*S (batch folded into rows)
    M, D = h.shape
    Dh = D // n_head
    scale = 1.0 / math.sqrt(Dh)

    def _ln(x, g, b):
        mu = jnp.mean(x, axis=-1, keepdims=True)
        var = jnp.mean((x - mu) ** 2, axis=-1, keepdims=True)
        return (x - mu) * jax.lax.rsqrt(var + 1e-5) * g + b

    # In-kernel causal + key-padding additive bias (a few VPU ops, no HBM (B,S,S) stream).
    rows = jax.lax.broadcasted_iota(jnp.int32, (S, S), 0)
    cols = jax.lax.broadcasted_iota(jnp.int32, (S, S), 1)
    causal = jnp.where(cols <= rows, 0.0, -1e9).astype(f32)                 # (S, S)
    bias = causal[None, :, :] + (1.0 - mask_ref[...])[:, None, :] * (-1e9)  # (B, S, S)

    # --- ln_1 + fused qkv projection: one (M, D) @ (D, 3D) MXU matmul ---
    x = _ln(h, ln1g_ref[0], ln1b_ref[0])
    qkv = jnp.dot(x.astype(bf16), wqkv_ref[0],
                  preferred_element_type=f32) + bqkv_ref[0]                 # (M, 3D)
    qkv = qkv.reshape(B, S, 3 * D)

    # --- causal self-attention: static head loop, batch folded into each contraction ---
    ctx_heads = []
    for hh in range(n_head):
        c0 = hh * Dh
        q = qkv[:, :, c0:c0 + Dh]                                           # (B, S, Dh)
        k = qkv[:, :, D + c0:D + c0 + Dh]
        v = qkv[:, :, 2 * D + c0:2 * D + c0 + Dh]
        s = jnp.einsum('bqd,bkd->bqk', q.astype(bf16), k.astype(bf16),
                       preferred_element_type=f32) * scale + bias           # (B, S, S)
        m = jnp.max(s, axis=-1, keepdims=True)
        p = jnp.exp(s - m)                                                  # f32 softmax
        p = p / jnp.sum(p, axis=-1, keepdims=True)                          # exact recip
        ctx_heads.append(jnp.einsum('bqk,bkd->bqd', p.astype(bf16),
                                    v.astype(bf16), preferred_element_type=f32))
    ctx = jnp.concatenate(ctx_heads, axis=-1).reshape(M, D)

    # --- attention output projection + residual ---
    h = h + jnp.dot(ctx.astype(bf16), wproj_ref[0],
                    preferred_element_type=f32) + bproj_ref[0]

    # --- ln_2 + MLP (fc -> gelu_new -> proj) + residual ---
    x2 = _ln(h, ln2g_ref[0], ln2b_ref[0])
    u = jnp.dot(x2.astype(bf16), wfc_ref[0],
                preferred_element_type=f32) + bfc_ref[0]
    u = 0.5 * u * (1.0 + jnp.tanh(0.7978845608028654 * (u + 0.044715 * u * u * u)))
    h = h + jnp.dot(u.astype(bf16), wmlp_ref[0],
                    preferred_element_type=f32) + bmlp_ref[0]

    o_ref[...] = h                        # stays resident until the last layer


_LAYER_KEYS = ("ln1_g", "ln1_b", "attn_w", "attn_b", "proj_w", "proj_b",
               "ln2_g", "ln2_b", "fc_w", "fc_b", "mlp_w", "mlp_b")


def gpt2_stack(params, h, key_mask, n_head):
    """h: (B*S, D) f32 residual stream, key_mask: (B, S) f32 -> (B*S, D) f32."""
    M, D = h.shape
    B, S = key_mask.shape
    layer_args = [params[k] for k in _LAYER_KEYS]
    n_layer = layer_args[0].shape[0]

    # Explicit VMEM budget: double-buffered per-layer weights + resident h/out/mask
    # + headroom for in-kernel temporaries.  Kept well under v7x's 64 MiB physical VMEM.
    per_layer_w = sum(_nbytes(a) // a.shape[0] for a in layer_args)
    vmem_limit = int(min(48 << 20,
                         2 * per_layer_w + 3 * _nbytes(h) + _nbytes(key_mask) + (8 << 20)))

    layer_specs = [pl.BlockSpec((1,) + tuple(a.shape[1:]), lambda l: (l, 0, 0))
                   for a in layer_args]

    return pl.pallas_call(
        functools.partial(_gpt2_stack_kernel, n_head=n_head, batch=B, seq=S),
        grid=(n_layer,),
        in_specs=[pl.BlockSpec((M, D), lambda l: (0, 0)),      # residual stream (read @ l==0)
                  pl.BlockSpec((B, S), lambda l: (0, 0))]      # key-padding mask
                 + layer_specs,
        out_specs=pl.BlockSpec((M, D), lambda l: (0, 0)),      # resident accumulator
        out_shape=jax.ShapeDtypeStruct((M, D), jnp.float32),
        compiler_params=pltpu.CompilerParams(
            dimension_semantics=("arbitrary",),                # layers are sequential
            vmem_limit_bytes=vmem_limit),
    )(h, key_mask, *layer_args)


# --------------------------------------------------------------------------- #
# Kernel 3: fused ln_f + tied lm_head + per-row cross-entropy.
#   grid = (row tiles: parallel, vocab tiles: arbitrary reduction).
#   ln_f is computed once per row tile (cached bf16 in VMEM); online logsumexp +
#   true-logit accumulators across vocab tiles.
# --------------------------------------------------------------------------- #
def _lmhead_ce_kernel(h_ref, wte_ref, lnfg_ref, lnfb_ref, lbl_ref,
                      logits_ref, nll_ref, x_sc, m_sc, l_sc, t_sc):
    j = pl.program_id(1)

    @pl.when(j == 0)
    def _():
        h = h_ref[...]
        mu = jnp.mean(h, axis=-1, keepdims=True)
        var = jnp.mean((h - mu) ** 2, axis=-1, keepdims=True)
        x = (h - mu) * jax.lax.rsqrt(var + 1e-5) * lnfg_ref[...] + lnfb_ref[...]
        x_sc[...] = x.astype(jnp.bfloat16)            # cached; only feeds the MXU
        m_sc[...] = jnp.full(m_sc.shape, -jnp.inf, m_sc.dtype)
        l_sc[...] = jnp.zeros_like(l_sc)
        t_sc[...] = jnp.zeros_like(t_sc)

    # tied lm_head: logits = x @ wte.T via dot_general (no transposed wte copy)
    logits = jax.lax.dot_general(x_sc[...], wte_ref[...],
                                 (((1,), (1,)), ((), ())),
                                 preferred_element_type=jnp.float32)        # (tm, tv)
    # API-parity output.  For training at real vocab sizes drop this store (or emit
    # bf16): it is the largest HBM stream in the model and the loss never reads it.
    logits_ref[...] = logits

    tv = logits.shape[1]
    m_new = jnp.maximum(m_sc[...], jnp.max(logits, axis=-1, keepdims=True))
    l_sc[...] = (l_sc[...] * jnp.exp(m_sc[...] - m_new)
                 + jnp.sum(jnp.exp(logits - m_new), axis=-1, keepdims=True))
    m_sc[...] = m_new
    col = jax.lax.broadcasted_iota(jnp.int32, logits.shape, 1) + j * tv
    t_sc[...] += jnp.sum(jnp.where(col == lbl_ref[...], logits, 0.0),
                         axis=-1, keepdims=True)

    @pl.when(j == pl.num_programs(1) - 1)
    def _():
        # (tm, 1) store is lane-masked; negligible here and vs the logits stream.
        nll_ref[...] = m_sc[...] + jnp.log(l_sc[...]) - t_sc[...]


def lm_head_ce(h, wte, ln_g, ln_b, labels):
    """h: (M, D) f32, wte: (V, D) bf16, labels: (M, 1) i32 -> (logits (M,V), nll (M,1))."""
    M, D = h.shape
    V = wte.shape[0]
    # Toy dims: single full tile (tm = M = 24, tv = V = 64).  At real GPT-2 scale use
    # tm = 128-256 rows and tile the vocab (tv <= 2048) so the double-buffered bf16 wte
    # tile + logits tile fit v7x's 64 MiB VMEM.
    tm, tv = M, V
    vmem_limit = int(min(48 << 20,
                         2 * (tv * D * 2 + tm * tv * 4)          # wte + logits tiles (x2 buf)
                         + _nbytes(h) + _nbytes(labels) + tm * D * 4 + (4 << 20)))
    return pl.pallas_call(
        _lmhead_ce_kernel,
        grid=(M // tm, V // tv),
        in_specs=[
            pl.BlockSpec((tm, D), lambda i, j: (i, 0)),
            pl.BlockSpec((tv, D), lambda i, j: (j, 0)),
            pl.BlockSpec((1, D), lambda i, j: (0, 0)),
            pl.BlockSpec((1, D), lambda i, j: (0, 0)),
            pl.BlockSpec((tm, 1), lambda i, j: (i, 0)),
        ],
        out_specs=(
            pl.BlockSpec((tm, tv), lambda i, j: (i, j)),
            pl.BlockSpec((tm, 1), lambda i, j: (i, 0)),
        ),
        out_shape=(
            jax.ShapeDtypeStruct((M, V), jnp.float32),
            jax.ShapeDtypeStruct((M, 1), jnp.float32),
        ),
        scratch_shapes=[pltpu.VMEM((tm, D), jnp.bfloat16),       # cached ln_f(h)
                        pltpu.VMEM((tm, 1), jnp.float32),        # running max
                        pltpu.VMEM((tm, 1), jnp.float32),        # running sum
                        pltpu.VMEM((tm, 1), jnp.float32)],       # true-logit acc
        compiler_params=pltpu.CompilerParams(
            dimension_semantics=("parallel", "arbitrary"),
            vmem_limit_bytes=vmem_limit),
    )(h, wte, ln_g, ln_b, labels)


# ------------------------------- model definition --------------------------- #
class Config:
    prefix_length = 4          # <= 10 -> clip_project is the MLP (Linear, Tanh, Linear)
    prefix_size = 32           # stands in for 512 (CLIP feature size)
    d_model = 32               # gpt_embedding_size
    n_head = 4
    n_layer = 2
    vocab = 64
    n_positions = 16


def init_params(cfg, key):
    ks = iter(jax.random.split(key, 16))
    f32, bf16 = jnp.float32, jnp.bfloat16

    def n(shape, dtype=bf16):
        return (0.02 * jax.random.normal(next(ks), shape, dtype=f32)).astype(dtype)

    D, V, L = cfg.d_model, cfg.vocab, cfg.n_layer
    hid = D * cfg.prefix_length // 2
    out = D * cfg.prefix_length
    return {
        "wte": n((V, D)),                                # bf16 (tied embedding / lm_head)
        "wpe": n((cfg.n_positions, D), f32),
        "clip_w1": n((cfg.prefix_size, hid)), "clip_b1": jnp.zeros((1, hid), f32),
        "clip_w2": n((hid, out)),             "clip_b2": jnp.zeros((1, out), f32),
        "ln_f_g": jnp.ones((1, D), f32), "ln_f_b": jnp.zeros((1, D), f32),
        # transformer block weights stacked along a leading layer axis
        "ln1_g": jnp.ones((L, 1, D), f32), "ln1_b": jnp.zeros((L, 1, D), f32),
        "attn_w": n((L, D, 3 * D)), "attn_b": jnp.zeros((L, 1, 3 * D), f32),
        "proj_w": n((L, D, D)),     "proj_b": jnp.zeros((L, 1, D), f32),
        "ln2_g": jnp.ones((L, 1, D), f32), "ln2_b": jnp.zeros((L, 1, D), f32),
        "fc_w": n((L, D, 4 * D)),   "fc_b": jnp.zeros((L, 1, 4 * D), f32),
        "mlp_w": n((L, 4 * D, D)),  "mlp_b": jnp.zeros((L, 1, D), f32),
    }


def clip_caption_forward(params, cfg, tokens, prefix, mask=None, labels=None):
    """Mirrors ClipCaptionModel.forward; returns (loss, logits)."""
    B, S_txt = tokens.shape
    D, L = cfg.d_model, cfg.prefix_length
    S = L + S_txt

    # embeddingText = self.gpt.transformer.wte(tokens)   (gather = glue)
    embedding_text = jnp.take(params["wte"], tokens, axis=0).astype(jnp.float32)
    # prefixProjections = self.clip_project(prefix).view(-1, L, D)   (fused kernel)
    prefix_proj = clip_project(prefix, params["clip_w1"], params["clip_b1"],
                               params["clip_w2"], params["clip_b2"]).reshape(B, L, D)
    embedding_cat = jnp.concatenate([prefix_proj, embedding_text], axis=1)   # (B, S, D)

    # positional embeddings; batch folded into the matmul row dim for the stack kernel
    h = (embedding_cat + params["wpe"][:S][None]).reshape(B * S, D)
    key_mask = (jnp.ones((B, S), jnp.float32) if mask is None
                else mask.astype(jnp.float32))

    h = gpt2_stack(params, h, key_mask, cfg.n_head)                          # (B*S, D)

    # labels = [dummy(prefix zeros); tokens], shifted left by one (HF GPT-2 shift)
    if labels is not None:
        labels_full = jnp.concatenate(
            [jnp.zeros((B, L), tokens.dtype), tokens], axis=1)               # getDummyToken
        shift = jnp.concatenate(
            [labels_full[:, 1:], jnp.zeros((B, 1), labels_full.dtype)], axis=1)
    else:
        shift = jnp.zeros((B, S), jnp.int32)

    logits_flat, nll = lm_head_ce(h, params["wte"],
                                  params["ln_f_g"], params["ln_f_b"],
                                  shift.reshape(B * S, 1).astype(jnp.int32))
    logits = logits_flat.reshape(B, S, cfg.vocab)

    loss = None
    if labels is not None:
        # mean over B*(S-1) shifted rows (HF GPT2LMHeadModel default CE; prefix dummy
        # rows included, exactly as the reference forward does)
        loss = jnp.mean(nll.reshape(B, S)[:, :-1])
    return loss, logits


# ----------------------------------- main ----------------------------------- #
if __name__ == "__main__":
    cfg = Config()
    key = jax.random.PRNGKey(0)
    kp, kt, kx = jax.random.split(key, 3)

    params = init_params(cfg, kp)
    B, S_txt = 2, 8
    tokens = jax.random.randint(kt, (B, S_txt), 0, cfg.vocab, dtype=jnp.int32)
    prefix = jax.random.normal(kx, (B, cfg.prefix_size), dtype=jnp.float32)

    loss, logits = clip_caption_forward(params, cfg, tokens, prefix,
                                        mask=None, labels=tokens)
    jax.block_until_ready((loss, logits))
    assert logits.shape == (B, cfg.prefix_length + S_txt, cfg.vocab)
    assert bool(jnp.isfinite(loss))
    print("KERNEL_OK")
</pallas_src>

<mosaic_0001>
module attributes {stable_mosaic.version = 11 : i64} {
  func.func @_clip_mlp_kernel(%arg0: memref<2x32xf32, #tpu.memory_space<vmem>>, %arg1: memref<32x64xbf16, #tpu.memory_space<vmem>>, %arg2: memref<1x64xf32, #tpu.memory_space<vmem>>, %arg3: memref<64x128xbf16, #tpu.memory_space<vmem>>, %arg4: memref<1x128xf32, #tpu.memory_space<vmem>>, %arg5: memref<2x128xf32, #tpu.memory_space<vmem>>) attributes {dimension_semantics = [], scalar_prefetch = 0 : i64, scratch_operands = 0 : i64, tpu.core_type = #tpu.core_type<tc>} {
    %c0 = arith.constant 0 : index
    %c0_0 = arith.constant 0 : index
    %0 = vector.load %arg0[%c0, %c0_0] : memref<2x32xf32, #tpu.memory_space<vmem>>, vector<2x32xf32>
    %1 = arith.truncf %0 : vector<2x32xf32> to vector<2x32xbf16>
    %c0_1 = arith.constant 0 : index
    %c0_2 = arith.constant 0 : index
    %2 = vector.load %arg1[%c0_1, %c0_2] : memref<32x64xbf16, #tpu.memory_space<vmem>>, vector<32x64xbf16>
    %cst = arith.constant dense<0.000000e+00> : vector<2x64xf32>
    %3 = tpu.matmul %1, %2, %cst {dimension_numbers = #tpu.dot_dimension_numbers<[1], [0], [0], [1], [0, 0, 1, 1], [], []>} : vector<2x32xbf16>, vector<32x64xbf16>, vector<2x64xf32> -> vector<2x64xf32>
    %c0_3 = arith.constant 0 : index
    %c0_4 = arith.constant 0 : index
    %4 = vector.load %arg2[%c0_3, %c0_4] : memref<1x64xf32, #tpu.memory_space<vmem>>, vector<1x64xf32>
    %5 = vector.broadcast %4 : vector<1x64xf32> to vector<2x64xf32>
    %6 = arith.addf %3, %5 : vector<2x64xf32>
    %7 = math.tanh %6 : vector<2x64xf32>
    %8 = arith.truncf %7 : vector<2x64xf32> to vector<2x64xbf16>
    %c0_5 = arith.constant 0 : index
    %c0_6 = arith.constant 0 : index
    %9 = vector.load %arg3[%c0_5, %c0_6] : memref<64x128xbf16, #tpu.memory_space<vmem>>, vector<64x128xbf16>
    %cst_7 = arith.constant dense<0.000000e+00> : vector<2x128xf32>
    %10 = tpu.matmul %8, %9, %cst_7 {dimension_numbers = #tpu.dot_dimension_numbers<[1], [0], [0], [1], [0, 0, 1, 1], [], []>} : vector<2x64xbf16>, vector<64x128xbf16>, vector<2x128xf32> -> vector<2x128xf32>
    %c0_8 = arith.constant 0 : index
    %c0_9 = arith.constant 0 : index
    %11 = vector.load %arg4[%c0_8, %c0_9] : memref<1x128xf32, #tpu.memory_space<vmem>>, vector<1x128xf32>
    %12 = vector.broadcast %11 : vector<1x128xf32> to vector<2x128xf32>
    %13 = arith.addf %10, %12 : vector<2x128xf32>
    %c0_10 = arith.constant 0 : index
    %c0_11 = arith.constant 0 : index
    %14 = vector.load %arg5[%c0_10, %c0_11] : memref<2x128xf32, #tpu.memory_space<vmem>>, vector<2x128xf32>
    tpu.vector_store %arg5[%c0_10, %c0_11], %13 {strides = array<i32>} : memref<2x128xf32, #tpu.memory_space<vmem>>, vector<2x128xf32>,
    return
  }
}

</mosaic_0001>

<llo_original>
// kernel: tpu_custom_call.1
$region0: #{tpu_custom_call.1}
  #allocation0 [shape = 'u32[]', space=smem, size = 0x4, offset = 0x4, fixed_abs, tag = 'smem constant byte address 0x4 - core index']
  #allocation1 [shape = 'u32[144,128]{1,0:T(1,128)}', space=vmem, size = 0x12000, scoped, tag = 'internal scratch']
  %s0 = inlined_call_operand.hbm [shape: f32[2,32], index: 0, kind: input, shape index: {}]
  %s1 = inlined_call_operand.hbm [shape: bf16[32,64], index: 1, kind: input, shape index: {}]
  %s2 = inlined_call_operand.vmem [shape: f32[1,64], index: 2, kind: input, shape index: {}]
  %s3 = inlined_call_operand.hbm [shape: bf16[64,128], index: 3, kind: input, shape index: {}]
  %s4 = inlined_call_operand.vmem [shape: f32[1,128], index: 4, kind: input, shape index: {}]
  %s5 = inlined_call_operand.hbm [shape: f32[2,128], index: 5, kind: output, shape index: {}]
  %s6 = sld [smem:[#allocation0]]
  $region42: #{tpu_custom_call.1} parent=0
    _
  %s8 = ssub.s32 1, %s6
  %s9 = scalar_select 0, %s8, %s6
  $region1: #{tpu_custom_call.1} parent=0
    #allocation2 [shape = 'u8[1024]{0}', space=vmem, size = 0x400, scoped, tag = 'input window, operand 0, single buffered']
    #allocation3 [shape = 's32[1]{0}', space=sflag, size = 0x4, scoped, tag = 'scoped memory for tpu_custom_call.1']
    #allocation4 [shape = 's32[1]{0}', space=sflag, size = 0x4, scoped, tag = 'scoped memory for tpu_custom_call.1']
    #allocation5 [shape = 'u8[8192]{0}', space=vmem, size = 0x2000, scoped, tag = 'input window, operand 1, single buffered']
    #allocation6 [shape = 's32[1]{0}', space=sflag, size = 0x4, scoped, tag = 'scoped memory for tpu_custom_call.1']
    #allocation7 [shape = 'u8[16384]{0}', space=vmem, size = 0x4000, scoped, tag = 'input window, operand 3, single buffered']
    #allocation8 [shape = 'u8[1024]{0}', space=vmem, size = 0x400, scoped, tag = 'output window, operand 0, single buffered']
    %10 = vsyncpa [#allocation3], 0
    %11 = vsyncpa [#allocation6], 0
    %12 = vsyncpa [#allocation4], 0
    // Predicated region
    $region2: #{tpu_custom_call.1} parent=1 // pred_check
      _
    $region3: #{tpu_custom_call.1} parent=1 // pred_check_branch
      %14 = sbr.rel (0) target = $region5
    $region4: #{tpu_custom_call.1} parent=1 // pred_region
      %s16 = ssub.s32 32, 32
      %17 = vsyncadd [#allocation3], %s16
      %s19 = sshll.u32 [#allocation2], 4
      %s20 = int_to_ptr.vmem [resolvable:$true] %s19
      %22 = dma.hbm_to_vmem [thread:$0]  %s0, 32, %s20, [#allocation3]
    $region5: #{tpu_custom_call.1} parent=1 // pred_fallthru
      _
    // Predicated region
    $region6: #{tpu_custom_call.1} parent=1 // pred_check
      _
    $region7: #{tpu_custom_call.1} parent=1 // pred_check_branch
      %24 = sbr.rel (0) target = $region9
    $region8: #{tpu_custom_call.1} parent=1 // pred_region
      %s26 = ssub.s32 256, 256
      %27 = vsyncadd [#allocation6], %s26
      %s28 = sshll.u32 [#allocation5], 4
      %s29 = int_to_ptr.vmem [resolvable:$true] %s28
      %34 = dma.hbm_to_vmem [thread:$0]  %s1, 256, %s29, [#allocation6], 64, 64, 4
    $region9: #{tpu_custom_call.1} parent=1 // pred_fallthru
      _
    // Predicated region
    $region10: #{tpu_custom_call.1} parent=1 // pred_check
      _
    $region11: #{tpu_custom_call.1} parent=1 // pred_check_branch
      %36 = sbr.rel (0) target = $region13
    $region12: #{tpu_custom_call.1} parent=1 // pred_region
      _
    $region13: #{tpu_custom_call.1} parent=1 // pred_fallthru
      _
    // Predicated region
    $region14: #{tpu_custom_call.1} parent=1 // pred_check
      _
    $region15: #{tpu_custom_call.1} parent=1 // pred_check_branch
      %38 = sbr.rel (0) target = $region17
    $region16: #{tpu_custom_call.1} parent=1 // pred_region
      %s40 = ssub.s32 512, 512
      %41 = vsyncadd [#allocation6], %s40
      %s42 = sshll.u32 [#allocation7], 4
      %s43 = int_to_ptr.vmem [resolvable:$true] %s42
      %48 = dma.hbm_to_vmem [thread:$0]  %s3, 512, %s43, [#allocation6], 64, 64, 4
    $region17: #{tpu_custom_call.1} parent=1 // pred_fallthru
      _
    // Predicated region
    $region18: #{tpu_custom_call.1} parent=1 // pred_check
      _
    $region19: #{tpu_custom_call.1} parent=1 // pred_check_branch
      %50 = sbr.rel (0) target = $region21
    $region20: #{tpu_custom_call.1} parent=1 // pred_region
      _
    $region21: #{tpu_custom_call.1} parent=1 // pred_fallthru
      _
    // Predicated region
    $region22: #{tpu_custom_call.1} parent=1 // pred_check
      _
    $region23: #{tpu_custom_call.1} parent=1 // pred_check_branch
      %52 = sbr.rel (0) target = $region25
    $region24: #{tpu_custom_call.1} parent=1 // pred_region
      %53 = dma.done [#allocation3], 32
    $region25: #{tpu_custom_call.1} parent=1 // pred_fallthru
      _
    // Predicated region
    $region26: #{tpu_custom_call.1} parent=1 // pred_check
      _
    $region27: #{tpu_custom_call.1} parent=1 // pred_check_branch
      %55 = sbr.rel (0) target = $region29
    $region28: #{tpu_custom_call.1} parent=1 // pred_region
      %56 = dma.done [#allocation6], 256
    $region29: #{tpu_custom_call.1} parent=1 // pred_fallthru
      _
    // Predicated region
    $region30: #{tpu_custom_call.1} parent=1 // pred_check
      _
    $region31: #{tpu_custom_call.1} parent=1 // pred_check_branch
      %58 = sbr.rel (0) target = $region33
    $region32: #{tpu_custom_call.1} parent=1 // pred_region
      %59 = dma.done [#allocation6], 512
    $region33: #{tpu_custom_call.1} parent=1 // pred_fallthru
      _
    %v61 = vld [vmem:[#allocation2] sm:$0x3]
    %v62 = vpack.c.bf16 %v61, %v61
    %v63 = vld [vmem:[#allocation5] sm:$0xf]
    %v64 = vld [vmem:[#allocation5 + $0x4] sm:$0xf]
    %v65 = vld [vmem:[#allocation5 + $0x8] sm:$0xf]
    %v66 = vld [vmem:[#allocation5 + $0xc] sm:$0xf]
    %v67 = vld [vmem:[%s2] sm:$0x1]
    %v69 = vlaneseq
    %v70 = vshrl.u32 %v69, 7
    %v71 = vsub.s32 0, %v70
    %v72 = vrot.slane %v67, %v71
    %v78 = vunpack.c.l.b16 %v63
    %v79 = vunpack.c.l.b16 %v64
    %v80 = vunpack.c.l.b16 %v65
    %v81 = vunpack.c.l.b16 %v66
    %v82 = vpack.c.b16 %v79, %v78
    %v83 = vpack.c.b16 %v81, %v80
    %vm86 = vcmask 261120
    %v88 = vsel %vm86, %v62, 0
    %90 = vmatprep.subr.bf16.mxu0 0
    %91 = vmatpush1.bf16.msra.mxu0 %v82
    %92 = vmatprep.subr.bf16.mxu0 0
    %93 = vmatpush1.bf16.msra.mxu0 %v83
    %94 = vmatprep.subr.bf16.mxu0 0
    %95 = vmatpush1.bf16.msra.mxu0 0
    %96 = vmatprep.subr.bf16.mxu0 0
    %97 = vmatpush1.bf16.msra.mxu0 0
    %98 = vmatprep.subr.bf16.mxu0 0
    %99 = vmatpush1.bf16.msra.mxu0 0
    %100 = vmatprep.subr.bf16.mxu0 0
    %101 = vmatpush1.bf16.msra.mxu0 0
    %102 = vmatprep.subr.bf16.mxu0 0
    %103 = vmatpush1.bf16.msra.mxu0 0
    %104 = vmatprep.subr.bf16.mxu0 0
    %105 = vmatpush1.bf16.msra.mxu0 0
    %106 = vmatprep.subr.bf16.mxu0 0
    %107 = vmatpush1.bf16.msra.mxu0 0
    %108 = vmatprep.subr.bf16.mxu0 0
    %109 = vmatpush1.bf16.msra.mxu0 0
    %110 = vmatprep.subr.bf16.mxu0 0
    %111 = vmatpush1.bf16.msra.mxu0 0
    %112 = vmatprep.subr.bf16.mxu0 0
    %113 = vmatpush1.bf16.msra.mxu0 0
    %114 = vmatprep.subr.bf16.mxu0 0
    %115 = vmatpush1.bf16.msra.mxu0 0
    %116 = vmatprep.subr.bf16.mxu0 0
    %117 = vmatpush1.bf16.msra.mxu0 0
    %118 = vmatprep.subr.bf16.mxu0 0
    %119 = vmatpush1.bf16.msra.mxu0 0
    %120 = vmatprep.subr.bf16.mxu0 0
    %121 = vmatpush1.bf16.msra.mxu0 0
    %122 = vmatprep.mubr.bf16.mxu0 0
    %123 = vmatmul.mubr.bf16.gmra.mrb[0].mxu0 %v88
    %v124 = vpop.f32.mrb[0].mxu0
    %v125 = vadd.f32 %v72, %v124
    %v126 = vpop.f32.mrb[0].mxu0
    %v127 = vpop.f32.mrb[0].mxu0
    %v128 = vpop.f32.mrb[0].mxu0
    %129 = vdwg.mxu0
    %v130 = vtanh.pop %v125
    %v131 = vpack.c.bf16 %v130, %v130
    %v132 = vld [vmem:[#allocation7] sm:$0xf]
    %v133 = vld [vmem:[#allocation7 + $0x4] sm:$0xf]
    %v134 = vld [vmem:[#allocation7 + $0x8] sm:$0xf]
    %v135 = vld [vmem:[#allocation7 + $0xc] sm:$0xf]
    %v136 = vld [vmem:[#allocation7 + $0x10] sm:$0xf]
    %v137 = vld [vmem:[#allocation7 + $0x14] sm:$0xf]
    %v138 = vld [vmem:[#allocation7 + $0x18] sm:$0xf]
    %v139 = vld [vmem:[#allocation7 + $0x1c] sm:$0xf]
    %v140 = vld [vmem:[%s4] sm:$0x1]
    %v142 = vlaneseq
    %v143 = vshrl.u32 %v142, 7
    %v144 = vsub.s32 0, %v143
    %v145 = vrot.slane %v140, %v144
    %v155 = vunpack.c.l.b16 %v132
    %v156 = vunpack.c.l.b16 %v133
    %v157 = vunpack.c.l.b16 %v134
    %v158 = vunpack.c.l.b16 %v135
    %v159 = vunpack.c.l.b16 %v136
    %v160 = vunpack.c.l.b16 %v137
    %v161 = vunpack.c.l.b16 %v138
    %v162 = vunpack.c.l.b16 %v139
    %v163 = vpack.c.b16 %v156, %v155
    %v164 = vpack.c.b16 %v158, %v157
    %v165 = vpack.c.b16 %v160, %v159
    %v166 = vpack.c.b16 %v162, %v161
    %vm171 = vcmask 523264
    %v173 = vsel %vm171, %v131, 0
    %175 = vmatprep.subr.bf16.mxu0 0
    %176 = vmatpush1.bf16.msra.mxu0 %v163
    %177 = vmatprep.subr.bf16.mxu0 0
    %178 = vmatpush1.bf16.msra.mxu0 %v164
    %179 = vmatprep.subr.bf16.mxu0 0
    %180 = vmatpush1.bf16.msra.mxu0 %v165
    %181 = vmatprep.subr.bf16.mxu0 0
    %182 = vmatpush1.bf16.msra.mxu0 %v166
    %183 = vmatprep.subr.bf16.mxu0 0
    %184 = vmatpush1.bf16.msra.mxu0 0
    %185 = vmatprep.subr.bf16.mxu0 0
    %186 = vmatpush1.bf16.msra.mxu0 0
    %187 = vmatprep.subr.bf16.mxu0 0
    %188 = vmatpush1.bf16.msra.mxu0 0
    %189 = vmatprep.subr.bf16.mxu0 0
    %190 = vmatpush1.bf16.msra.mxu0 0
    %191 = vmatprep.subr.bf16.mxu0 0
    %192 = vmatpush1.bf16.msra.mxu0 0
    %193 = vmatprep.subr.bf16.mxu0 0
    %194 = vmatpush1.bf16.msra.mxu0 0
    %195 = vmatprep.subr.bf16.mxu0 0
    %196 = vmatpush1.bf16.msra.mxu0 0
    %197 = vmatprep.subr.bf16.mxu0 0
    %198 = vmatpush1.bf16.msra.mxu0 0
    %199 = vmatprep.subr.bf16.mxu0 0
    %200 = vmatpush1.bf16.msra.mxu0 0
    %201 = vmatprep.subr.bf16.mxu0 0
    %202 = vmatpush1.bf16.msra.mxu0 0
    %203 = vmatprep.subr.bf16.mxu0 0
    %204 = vmatpush1.bf16.msra.mxu0 0
    %205 = vmatprep.subr.bf16.mxu0 0
    %206 = vmatpush1.bf16.msra.mxu0 0
    %207 = vmatprep.mubr.bf16.mxu0 0
    %208 = vmatmul.mubr.bf16.gmra.mrb[0].mxu0 %v173
    %v209 = vpop.f32.mrb[0].mxu0
    %v210 = vadd.f32 %v145, %v209
    %v211 = vpop.f32.mrb[0].mxu0
    %v212 = vpop.f32.mrb[0].mxu0
    %v213 = vpop.f32.mrb[0].mxu0
    %214 = vdwg.mxu0
    %215 = vst [vmem:[#allocation8] sm:$0x3] %v210
    // Predicated region
    $region34: #{tpu_custom_call.1} parent=1 // pred_check
      _
    $region35: #{tpu_custom_call.1} parent=1 // pred_check_branch
      %217 = sbr.rel (0) target = $region37
    $region36: #{tpu_custom_call.1} parent=1 // pred_region
      %s219 = ssub.s32 32, 32
      %220 = vsyncadd [#allocation4], %s219
      %s222 = sshll.u32 [#allocation8], 4
      %s223 = int_to_ptr.vmem [resolvable:$true] %s222
      %225 = dma.vmem_to_hbm [thread:$0]  %s223, 32, %s5, [#allocation4]
    $region37: #{tpu_custom_call.1} parent=1 // pred_fallthru
      _
    // Predicated region
    $region38: #{tpu_custom_call.1} parent=1 // pred_check
      _
    $region39: #{tpu_custom_call.1} parent=1 // pred_check_branch
      %227 = sbr.rel (0) target = $region41
    $region40: #{tpu_custom_call.1} parent=1 // pred_region
      %228 = dma.done [#allocation4], 32
    $region41: #{tpu_custom_call.1} parent=1 // pred_fallthru
      _
    %229 = vsyncpa [#allocation3], 1
    %230 = vsyncpa [#allocation6], 1
    %231 = vsyncpa [#allocation4], 1

</llo_original>
